<compile_context>
chip_gen: v7x
topology: tpu7x:2x2x1
jax: 0.10.0
libtpu: 0.0.40
codegen_flags: <defaults>
</compile_context>

<pallas_src>
import math

import jax
import jax.numpy as jnp
from jax.experimental import pallas as pl
from jax.experimental.pallas import tpu as pltpu

_LANES = 128  # fast (lane) axis width of a vreg


def _round_up(x: int, m: int) -> int:
    return ((x + m - 1) // m) * m


def _rescale_kernel(ss_ref, x_ref, o_ref):
    # ss_ref: (2,) f32 in SMEM -> [scale, shift]
    # x_ref / o_ref: (block_rows, 128) lane-dense tile in VMEM
    s = ss_ref[0]
    b = ss_ref[1]
    o_ref[...] = (x_ref[...].astype(jnp.float32) * s + b).astype(o_ref.dtype)


def rescale(x, scale, shift, *, block_rows=4096, small_n_threshold=65536):
    """out = x * scale + shift, elementwise.

    x: (N, 1) or (N,) array of per-atom energies (any elementwise shape works).
    scale, shift: python floats or 0-d / (1,)-shaped arrays.
    """
    orig_shape = x.shape
    n = math.prod(orig_shape) if orig_shape else 1

    s = jnp.asarray(scale, jnp.float32).reshape(())
    b = jnp.asarray(shift, jnp.float32).reshape(())

    # Fast path: for small tensors the standalone kernel cannot win (it costs
    # a full HBM read+write plus dispatch); let XLA fuse the affine instead.
    if n < small_n_threshold:
        return (x.astype(jnp.float32) * s + b).astype(x.dtype)

    # Lane-dense view: (rows, 128).  When N % 128 == 0 this reshape is free.
    flat = x.reshape(n)
    rows = -(-n // _LANES)
    n_lane = rows * _LANES
    if n_lane != n:
        # Only for large ragged N: <=127-element lane pad (full-tensor copy).
        flat = jnp.pad(flat, (0, n_lane - n))
    x2d = flat.reshape(rows, _LANES)

    # Block sizing: 2 MiB-class blocks, rounded to 16 rows (bf16-safe), and
    # never more than ceil(rows/2) so large inputs always produce >= 2 blocks
    # for v7x 2-TC sharding.  8 MiB pipelined footprint fits all generations'
    # default scoped VMEM, so no vmem_limit_bytes override is needed.
    two_way = _round_up(max(1, -(-rows // 2)), 16)
    br = max(16, min(block_rows, two_way))
    grid = (-(-rows // br),)

    ss = jnp.stack([s, b])  # (2,) f32 -> single SMEM operand

    out2d = pl.pallas_call(
        _rescale_kernel,
        out_shape=jax.ShapeDtypeStruct((rows, _LANES), x.dtype),
        grid=grid,
        in_specs=[
            pl.BlockSpec(memory_space=pltpu.SMEM),          # scale/shift scalars
            pl.BlockSpec((br, _LANES), lambda i: (i, 0)),   # lane-dense tile
        ],
        out_specs=pl.BlockSpec((br, _LANES), lambda i: (i, 0)),
        compiler_params=pltpu.CompilerParams(
            dimension_semantics=("parallel",)),
    )(ss, x2d)

    out = out2d.reshape(n_lane)
    if n_lane != n:
        out = out[:n]
    return out.reshape(orig_shape)


class RescalePallas:
    """Mirrors sevenn.nn.scale.Rescale: data[out_key] = data[in_key]*scale+shift."""

    def __init__(self, shift: float, scale: float,
                 data_key_in: str = "scaled_atomic_energy",
                 data_key_out: str = "atomic_energy",
                 train_shift_scale: bool = False):
        # nn.Parameter(FloatTensor([shift])) -> shape (1,) float32
        self.shift = jnp.asarray([shift], jnp.float32)
        self.scale = jnp.asarray([scale], jnp.float32)
        self.key_input = data_key_in
        self.key_output = data_key_out

    def __call__(self, data: dict) -> dict:
        data[self.key_output] = rescale(data[self.key_input],
                                        self.scale, self.shift)
        return data


if __name__ == "__main__":
    key = jax.random.PRNGKey(0)
    n_atoms = 200  # deliberately not a multiple of 128
    x = jax.random.normal(key, (n_atoms, 1), dtype=jnp.float32)

    shift_val, scale_val = -3.25, 1.75  # deterministic "init"
    module = RescalePallas(shift=shift_val, scale=scale_val)

    # 1) Module path (small N -> fast path, matches reference semantics).
    data = {"scaled_atomic_energy": x}
    data = module(data)
    out = jax.block_until_ready(data["atomic_energy"])
    ref = x * scale_val + shift_val
    assert out.shape == (n_atoms, 1)
    assert jnp.allclose(out, ref, atol=1e-6), "mismatch vs reference (fast path)"

    # 2) Force the Pallas kernel path on ragged N (lane-pad branch).
    out_k = jax.block_until_ready(
        rescale(x, scale_val, shift_val, small_n_threshold=0))
    assert out_k.shape == (n_atoms, 1)
    assert jnp.allclose(out_k, ref, atol=1e-6), "mismatch vs reference (kernel, ragged)"

    # 3) Force the Pallas kernel path on lane-aligned N (zero-copy reshape,
    #    >= 2 row-blocks -> exercises the multi-block / parallel-axis path).
    x2 = jax.random.normal(jax.random.PRNGKey(1), (4096, 1), dtype=jnp.float32)
    out2 = jax.block_until_ready(
        rescale(x2, scale_val, shift_val, small_n_threshold=0))
    assert jnp.allclose(out2, x2 * scale_val + shift_val, atol=1e-6), \
        "mismatch vs reference (kernel, aligned)"

    print("KERNEL_OK")
</pallas_src>

<mosaic_0001>
module attributes {stable_mosaic.version = 11 : i64} {
  func.func @_rescale_kernel(%arg0: i32, %arg1: memref<2xf32, #tpu.memory_space<smem>>, %arg2: memref<16x128xf32, #tpu.memory_space<vmem>>, %arg3: memref<16x128xf32, #tpu.memory_space<vmem>>) attributes {dimension_semantics = [#tpu.dimension_semantics<parallel>], iteration_bounds = array<i64: 1>, scalar_prefetch = 0 : i64, scratch_operands = 0 : i64, tpu.core_type = #tpu.core_type<tc>, window_params = [{transform_indices = @transform_0, window_bounds = array<i64: 2>}, {transform_indices = @transform_1, window_bounds = array<i64: 16, 128>}, {transform_indices = @transform_2, window_bounds = array<i64: 16, 128>}]} {
    %c0 = arith.constant 0 : index
    %0 = memref.load %arg1[%c0] : memref<2xf32, #tpu.memory_space<smem>>
    %c1 = arith.constant 1 : index
    %1 = memref.load %arg1[%c1] : memref<2xf32, #tpu.memory_space<smem>>
    %c0_0 = arith.constant 0 : index
    %c0_1 = arith.constant 0 : index
    %2 = vector.load %arg2[%c0_0, %c0_1] : memref<16x128xf32, #tpu.memory_space<vmem>>, vector<16x128xf32>
    %3 = vector.broadcast %0 : f32 to vector<16x128xf32>
    %4 = arith.mulf %2, %3 : vector<16x128xf32>
    %5 = vector.broadcast %1 : f32 to vector<16x128xf32>
    %6 = arith.addf %4, %5 : vector<16x128xf32>
    %c0_2 = arith.constant 0 : index
    %c0_3 = arith.constant 0 : index
    %7 = vector.load %arg3[%c0_2, %c0_3] : memref<16x128xf32, #tpu.memory_space<vmem>>, vector<16x128xf32>
    tpu.vector_store %arg3[%c0_2, %c0_3], %6 {strides = array<i32>} : memref<16x128xf32, #tpu.memory_space<vmem>>, vector<16x128xf32>,
    return
  }
  func.func @transform_0(%arg0: i32) -> i32 {
    %c0_i32 = arith.constant 0 : i32
    %c0_i32_0 = arith.constant 0 : i32
    return %c0_i32 : i32
  }
  func.func @transform_1(%arg0: i32) -> (i32, i32) {
    %c0_i32 = arith.constant 0 : i32
    %c0_i32_0 = arith.constant 0 : i32
    return %arg0, %c0_i32 : i32, i32
  }
  func.func @transform_2(%arg0: i32) -> (i32, i32) {
    %c0_i32 = arith.constant 0 : i32
    %c0_i32_0 = arith.constant 0 : i32
    return %arg0, %c0_i32 : i32, i32
  }
}

</mosaic_0001>

<llo_original>
// kernel: tpu_custom_call.1
$region0: #{tpu_custom_call.1}
  #allocation0 [shape = 'u32[]', space=smem, size = 0x4, offset = 0x4, fixed_abs, tag = 'smem constant byte address 0x4 - core index']
  #allocation1 [shape = 'u32[144,128]{1,0:T(1,128)}', space=vmem, size = 0x12000, scoped, tag = 'internal scratch']
  %s0 = inlined_call_operand.hbm [shape: f32[2], index: 0, kind: input, shape index: {}]
  %s1 = inlined_call_operand.vmem [shape: f32[2,128], index: 1, kind: input, shape index: {}]
  %s2 = inlined_call_operand.hbm [shape: f32[2,128], index: 2, kind: output, shape index: {}]
  %s3 = sld [smem:[#allocation0]]
  $region22: #{tpu_custom_call.1} parent=0
    _
  %s5 = ssub.s32 1, %s3
  %s6 = scalar_select 0, %s5, %s3
  $region1: #{tpu_custom_call.1} parent=0
    #allocation2 [shape = 'u8[512]{0}', space=smem, size = 0x200, scoped, tag = 'input window, operand 0, single buffered']
    #allocation3 [shape = 's32[1]{0}', space=sflag, size = 0x4, scoped, tag = 'scoped memory for tpu_custom_call.1']
    #allocation4 [shape = 's32[1]{0}', space=sflag, size = 0x4, scoped, tag = 'scoped memory for tpu_custom_call.1']
    #allocation5 [shape = 'u8[8192]{0}', space=vmem, size = 0x2000, scoped, tag = 'output window, operand 0, single buffered']
    %7 = vsyncpa [#allocation4], 0
    %8 = vsyncpa [#allocation3], 0
    // Predicated region
    $region2: #{tpu_custom_call.1} parent=1 // pred_check
      _
    $region3: #{tpu_custom_call.1} parent=1 // pred_check_branch
      %10 = sbr.rel (0) target = $region5
    $region4: #{tpu_custom_call.1} parent=1 // pred_region
      %s12 = ssub.s32 16, 16
      %13 = vsyncadd [#allocation4], %s12
      %16 = dma.hbm_to_smem %s0, 16, [#allocation2], [#allocation4]
    $region5: #{tpu_custom_call.1} parent=1 // pred_fallthru
      _
    // Predicated region
    $region6: #{tpu_custom_call.1} parent=1 // pred_check
      _
    $region7: #{tpu_custom_call.1} parent=1 // pred_check_branch
      %18 = sbr.rel (0) target = $region9
    $region8: #{tpu_custom_call.1} parent=1 // pred_region
      _
    $region9: #{tpu_custom_call.1} parent=1 // pred_fallthru
      _
    // Predicated region
    $region10: #{tpu_custom_call.1} parent=1 // pred_check
      _
    $region11: #{tpu_custom_call.1} parent=1 // pred_check_branch
      %20 = sbr.rel (0) target = $region13
    $region12: #{tpu_custom_call.1} parent=1 // pred_region
      %21 = dma.done [#allocation4], 16
    $region13: #{tpu_custom_call.1} parent=1 // pred_fallthru
      _
    %22 = sfence
    %s23 = sld [smem:[#allocation2]]
    %s24 = sld [smem:[#allocation2 + $0x1]]
    %v25 = vld [vmem:[%s1] sm:$0xff]
    %v26 = vld [vmem:[%s1 + $0x8] sm:$0xff]
    %v27 = vstv %s23
    %v28 = vmul.f32 %v25, %v27
    %v29 = vmul.f32 %v26, %v27
    %v30 = vstv %s24
    %v31 = vadd.f32 %v28, %v30
    %v32 = vadd.f32 %v29, %v30
    %33 = vst [vmem:[#allocation5] sm:$0xff] %v31
    %34 = vst [vmem:[#allocation5 + $0x8] sm:$0xff] %v32
    // Predicated region
    $region14: #{tpu_custom_call.1} parent=1 // pred_check
      _
    $region15: #{tpu_custom_call.1} parent=1 // pred_check_branch
      %36 = sbr.rel (0) target = $region17
    $region16: #{tpu_custom_call.1} parent=1 // pred_region
      %s38 = ssub.s32 256, 32
      %39 = vsyncadd [#allocation3], %s38
      %s40 = sshll.u32 [#allocation5], 4
      %s41 = int_to_ptr.vmem [resolvable:$true] %s40
      %46 = dma.vmem_to_hbm [thread:$0]  %s41, 32, %s2, [#allocation3], 32, 32, 2
    $region17: #{tpu_custom_call.1} parent=1 // pred_fallthru
      _
    // Predicated region
    $region18: #{tpu_custom_call.1} parent=1 // pred_check
      _
    $region19: #{tpu_custom_call.1} parent=1 // pred_check_branch
      %48 = sbr.rel (0) target = $region21
    $region20: #{tpu_custom_call.1} parent=1 // pred_region
      %49 = dma.done [#allocation3], 256
    $region21: #{tpu_custom_call.1} parent=1 // pred_fallthru
      _
    %50 = vsyncpa [#allocation3], 1
    %51 = vsyncpa [#allocation4], 1

</llo_original>
